<compile_context>
chip_gen: v7x
topology: tpu7x:2x2x1
jax: 0.10.0
libtpu: 0.0.40
codegen_flags: <defaults>
</compile_context>

<pallas_src>
import functools

import jax
import jax.numpy as jnp
from jax.experimental import pallas as pl
from jax.experimental.pallas import tpu as pltpu

_LANE = 128        # TPU lane width (last-dim tile)
_TILE_CAP = 4096   # max batch rows per grid step (~14 MiB peak VMEM per step)


def _round8(n: int) -> int:
    return -(-n // 8) * 8


def _slab(arr, rows):
    """Zero-pad a parameter into a (rows, 128) f32 lane-dense slab."""
    arr = jnp.atleast_2d(jnp.asarray(arr, jnp.float32))
    r, c = arr.shape
    assert r <= rows and c <= _LANE, (
        f"parameter block {arr.shape} does not fit slab ({rows}, {_LANE})")
    return jnp.zeros((rows, _LANE), jnp.float32).at[:r, :c].set(arr)


def pack_qnetwork_params(w1, b1, w2, b2, w3, b3):
    """Pack (w1,b1,w2,b2,w3,b3) into ONE lane-dense (rows, 128) f32 buffer.

    w2/w3 slabs are zero-padded to 128 rows so the kernel can chain full-lane
    (tb, 128) matmuls without any lane slicing of the parameters. Returns
    (packed_buffer, offsets) with `offsets` a static tuple of row offsets.
    """
    state_size, fc1 = w1.shape
    fc1_b, fc2 = w2.shape
    fc2_b, action = w3.shape
    assert fc1_b == fc1 and fc2_b == fc2, "inconsistent layer shapes"
    assert max(fc1, fc2, action) <= _LANE, "hidden/action dims must be <= 128"

    slabs = [
        _slab(w1, _round8(state_size)),  # real w1 in [:state_size, :fc1]
        _slab(b1, 8),                    # bias in row 0
        _slab(w2, _LANE),                # rows >= fc1 and cols >= fc2 are zero
        _slab(b2, 8),
        _slab(w3, _LANE),                # rows >= fc2 and cols >= action are zero
        _slab(b3, 8),
    ]
    offsets, row = [], 0
    for s in slabs:
        offsets.append(row)
        row += s.shape[0]
    return jnp.concatenate(slabs, axis=0), tuple(offsets)


def _make_qnetwork_kernel(offsets):
    """Fused 3-layer MLP kernel with static row offsets into the packed buffer."""
    w1o, b1o, w2o, b2o, w3o, b3o = offsets

    def kernel(x_ref, p_ref, out_ref):
        x = x_ref[...]                       # (tb, state_size) f32
        s = x.shape[-1]
        a = out_ref.shape[-1]

        # fc1 + ReLU -- full 128-lane slab; padding lanes stay exactly zero.
        w1 = p_ref[w1o:w1o + s, :]           # (state_size, 128)
        b1 = p_ref[b1o:b1o + 1, :]           # (1, 128)
        h1 = jnp.maximum(
            jnp.dot(x, w1, preferred_element_type=jnp.float32) + b1, 0.0)

        # fc2 + ReLU -- zero-padded rows/cols keep padding lanes zero.
        w2 = p_ref[w2o:w2o + _LANE, :]       # (128, 128)
        b2 = p_ref[b2o:b2o + 1, :]
        h2 = jnp.maximum(
            jnp.dot(h1, w2, preferred_element_type=jnp.float32) + b2, 0.0)

        # fc3 (no activation); only the first `action_size` lanes are real.
        w3 = p_ref[w3o:w3o + _LANE, :]       # (128, 128)
        b3 = p_ref[b3o:b3o + 1, :]
        q = jnp.dot(h2, w3, preferred_element_type=jnp.float32) + b3

        out_ref[...] = q[:, :a].astype(out_ref.dtype)

    return kernel


def _pick_tile_batch(batch: int) -> int:
    """Batch tile: multiple of 8, <= batch (boundary block masked by Pallas)."""
    full = max(8, (batch // 8) * 8)
    if full <= 1024:
        return full                      # single grid step for small batches
    # >= 2 grid steps so the "parallel" axis can use both v7x TensorCores;
    # cap so per-step VMEM (x/out double-buffers + intermediates) stays modest.
    half = _round8(-(-batch // 2))
    return min(_TILE_CAP, half)


@functools.partial(jax.jit,
                   static_argnames=("offsets", "action_size", "tile_batch"))
def qnetwork_forward(x, packed_params, *, offsets, action_size, tile_batch=None):
    """Q(state) -> action values. x: (batch, state_size) f32."""
    batch, state_size = x.shape

    if tile_batch is not None:
        tb = max(8, _round8(int(tile_batch)))   # enforce (8,128) sublane rule
    else:
        tb = _pick_tile_batch(batch)

    pr, pc = packed_params.shape
    kernel = _make_qnetwork_kernel(offsets)

    return pl.pallas_call(
        kernel,
        out_shape=jax.ShapeDtypeStruct((batch, action_size), jnp.float32),
        grid_spec=pltpu.PrefetchScalarGridSpec(
            num_scalar_prefetch=0,
            grid=(pl.cdiv(batch, tb),),          # no wrapper pad; ragged block masked
            in_specs=[
                pl.BlockSpec((tb, state_size), lambda i: (i, 0)),  # x tiled on batch
                pl.BlockSpec((pr, pc), lambda i: (0, 0)),          # params VMEM-resident
            ],
            out_specs=pl.BlockSpec((tb, action_size), lambda i: (i, 0)),
        ),
        compiler_params=pltpu.CompilerParams(
            dimension_semantics=("parallel",),   # shard batch across TCs on v7x
            vmem_limit_bytes=32 << 20,           # cover v5e's 16 MiB default
        ),
    )(x, packed_params)


def init_qnetwork_params(key, state_size, action_size, fc1_units=32, fc2_units=16):
    """Mimics PyTorch nn.Linear default init: U(-1/sqrt(fan_in), 1/sqrt(fan_in))."""
    def linear_init(k, fan_in, fan_out):
        kw, kb = jax.random.split(k)
        bound = 1.0 / jnp.sqrt(jnp.float32(fan_in))
        w = jax.random.uniform(kw, (fan_in, fan_out), jnp.float32, -bound, bound)
        b = jax.random.uniform(kb, (1, fan_out), jnp.float32, -bound, bound)
        return w, b

    k1, k2, k3 = jax.random.split(key, 3)
    w1, b1 = linear_init(k1, state_size, fc1_units)
    w2, b2 = linear_init(k2, fc1_units, fc2_units)
    w3, b3 = linear_init(k3, fc2_units, action_size)
    return w1, b1, w2, b2, w3, b3


def reference_forward(x, w1, b1, w2, b2, w3, b3):
    h1 = jnp.maximum(x @ w1 + b1, 0.0)
    h2 = jnp.maximum(h1 @ w2 + b2, 0.0)
    return h2 @ w3 + b3


if __name__ == "__main__":
    # Shapes consistent with the module: state_size=8, action_size=4,
    # fc1_units=32, fc2_units=16.
    state_size, action_size = 8, 4
    fc1_units, fc2_units = 32, 16

    key = jax.random.PRNGKey(0)
    kx1, kx2, kx3, kp = jax.random.split(key, 4)

    params = init_qnetwork_params(kp, state_size, action_size, fc1_units, fc2_units)
    packed, offsets = pack_qnetwork_params(*params)

    # 1) Small batch, single grid step.
    x_small = jax.random.normal(kx1, (8, state_size), jnp.float32)
    out_small = jax.block_until_ready(
        qnetwork_forward(x_small, packed, offsets=offsets, action_size=action_size))
    ref_small = reference_forward(x_small, *params)
    assert out_small.shape == (8, action_size), out_small.shape
    assert jnp.allclose(out_small, ref_small, atol=1e-5, rtol=1e-5), "small-batch mismatch"

    # 2) Non-multiple-of-8 batch, default tiling: exercises the ragged boundary
    #    block that replaced the wrapper jnp.pad (tb=128, grid=2).
    x_ragged = jax.random.normal(kx2, (130, state_size), jnp.float32)
    out_ragged = jax.block_until_ready(
        qnetwork_forward(x_ragged, packed, offsets=offsets, action_size=action_size))
    ref_ragged = reference_forward(x_ragged, *params)
    assert out_ragged.shape == (130, action_size), out_ragged.shape
    assert jnp.allclose(out_ragged, ref_ragged, atol=1e-5, rtol=1e-5), "ragged-batch mismatch"

    # 3) Multi-step grid with explicit tile (520 rows, tile 128 -> 5 steps,
    #    partial last block); weights stay VMEM-resident across steps.
    x_big = jax.random.normal(kx3, (520, state_size), jnp.float32)
    out_big = jax.block_until_ready(
        qnetwork_forward(x_big, packed, offsets=offsets, action_size=action_size,
                         tile_batch=128))
    ref_big = reference_forward(x_big, *params)
    assert out_big.shape == (520, action_size), out_big.shape
    assert jnp.allclose(out_big, ref_big, atol=1e-5, rtol=1e-5), "big-batch mismatch"

    print("KERNEL_OK")
</pallas_src>

<mosaic_0001>
module attributes {stable_mosaic.version = 11 : i64} {
  func.func @kernel(%arg0: i32, %arg1: memref<8x8xf32, #tpu.memory_space<vmem>>, %arg2: memref<288x128xf32, #tpu.memory_space<vmem>>, %arg3: memref<8x4xf32, #tpu.memory_space<vmem>>) attributes {dimension_semantics = [#tpu.dimension_semantics<parallel>], iteration_bounds = array<i64: 1>, scalar_prefetch = 0 : i64, scratch_operands = 0 : i64, tpu.core_type = #tpu.core_type<tc>, window_params = [{transform_indices = @transform_0, window_bounds = array<i64: 8, 8>}, {pipeline_mode = #tpu.pipeline_mode<synchronous>, transform_indices = @transform_1, window_bounds = array<i64: 288, 128>}, {transform_indices = @transform_2, window_bounds = array<i64: 8, 4>}]} {
    %c0 = arith.constant 0 : index
    %c0_0 = arith.constant 0 : index
    %0 = vector.load %arg1[%c0, %c0_0] : memref<8x8xf32, #tpu.memory_space<vmem>>, vector<8x8xf32>
    %c0_1 = arith.constant 0 : index
    %c0_2 = arith.constant 0 : index
    %1 = vector.load %arg2[%c0_1, %c0_2] : memref<288x128xf32, #tpu.memory_space<vmem>>, vector<8x128xf32>
    %c8 = arith.constant 8 : index
    %c0_3 = arith.constant 0 : index
    %2 = vector.load %arg2[%c8, %c0_3] : memref<288x128xf32, #tpu.memory_space<vmem>>, vector<1x128xf32>
    %cst = arith.constant dense<0.000000e+00> : vector<8x128xf32>
    %3 = tpu.matmul %0, %1, %cst {dimension_numbers = #tpu.dot_dimension_numbers<[1], [0], [0], [1], [0, 0, 1, 1], [], []>} : vector<8x8xf32>, vector<8x128xf32>, vector<8x128xf32> -> vector<8x128xf32>
    %4 = vector.broadcast %2 : vector<1x128xf32> to vector<8x128xf32>
    %5 = arith.addf %3, %4 : vector<8x128xf32>
    %cst_4 = arith.constant 0.000000e+00 : f32
    %6 = vector.broadcast %cst_4 : f32 to vector<8x128xf32>
    %7 = arith.maximumf %5, %6 : vector<8x128xf32>
    %c16 = arith.constant 16 : index
    %c0_5 = arith.constant 0 : index
    %8 = vector.load %arg2[%c16, %c0_5] : memref<288x128xf32, #tpu.memory_space<vmem>>, vector<128x128xf32>
    %c144 = arith.constant 144 : index
    %c0_6 = arith.constant 0 : index
    %9 = vector.load %arg2[%c144, %c0_6] : memref<288x128xf32, #tpu.memory_space<vmem>>, vector<1x128xf32>
    %cst_7 = arith.constant dense<0.000000e+00> : vector<8x128xf32>
    %10 = tpu.matmul %7, %8, %cst_7 {dimension_numbers = #tpu.dot_dimension_numbers<[1], [0], [0], [1], [0, 0, 1, 1], [], []>} : vector<8x128xf32>, vector<128x128xf32>, vector<8x128xf32> -> vector<8x128xf32>
    %11 = vector.broadcast %9 : vector<1x128xf32> to vector<8x128xf32>
    %12 = arith.addf %10, %11 : vector<8x128xf32>
    %cst_8 = arith.constant 0.000000e+00 : f32
    %13 = vector.broadcast %cst_8 : f32 to vector<8x128xf32>
    %14 = arith.maximumf %12, %13 : vector<8x128xf32>
    %c152 = arith.constant 152 : index
    %c0_9 = arith.constant 0 : index
    %15 = vector.load %arg2[%c152, %c0_9] : memref<288x128xf32, #tpu.memory_space<vmem>>, vector<128x128xf32>
    %c280 = arith.constant 280 : index
    %c0_10 = arith.constant 0 : index
    %16 = vector.load %arg2[%c280, %c0_10] : memref<288x128xf32, #tpu.memory_space<vmem>>, vector<1x128xf32>
    %cst_11 = arith.constant dense<0.000000e+00> : vector<8x128xf32>
    %17 = tpu.matmul %14, %15, %cst_11 {dimension_numbers = #tpu.dot_dimension_numbers<[1], [0], [0], [1], [0, 0, 1, 1], [], []>} : vector<8x128xf32>, vector<128x128xf32>, vector<8x128xf32> -> vector<8x128xf32>
    %18 = vector.broadcast %16 : vector<1x128xf32> to vector<8x128xf32>
    %19 = arith.addf %17, %18 : vector<8x128xf32>
    %20 = vector.extract_strided_slice %19 {offsets = [0, 0], sizes = [8, 4], strides = [1, 1]} : vector<8x128xf32> to vector<8x4xf32>
    %c0_12 = arith.constant 0 : index
    %c0_13 = arith.constant 0 : index
    %21 = vector.load %arg3[%c0_12, %c0_13] : memref<8x4xf32, #tpu.memory_space<vmem>>, vector<8x4xf32>
    tpu.vector_store %arg3[%c0_12, %c0_13], %20 {strides = array<i32>} : memref<8x4xf32, #tpu.memory_space<vmem>>, vector<8x4xf32>,
    return
  }
  func.func @transform_0(%arg0: i32) -> (i32, i32) {
    %c0_i32 = arith.constant 0 : i32
    %c0_i32_0 = arith.constant 0 : i32
    return %arg0, %c0_i32 : i32, i32
  }
  func.func @transform_1(%arg0: i32) -> (i32, i32) {
    %c0_i32 = arith.constant 0 : i32
    %c0_i32_0 = arith.constant 0 : i32
    %c0_i32_1 = arith.constant 0 : i32
    return %c0_i32, %c0_i32_0 : i32, i32
  }
  func.func @transform_2(%arg0: i32) -> (i32, i32) {
    %c0_i32 = arith.constant 0 : i32
    %c0_i32_0 = arith.constant 0 : i32
    return %arg0, %c0_i32 : i32, i32
  }
}

</mosaic_0001>

<llo_original>
// kernel: qnetwork_forward.1
$region0: #{qnetwork_forward.1}
  #allocation0 [shape = 'u32[]', space=smem, size = 0x4, offset = 0x4, fixed_abs, tag = 'smem constant byte address 0x4 - core index']
  #allocation1 [shape = 'u32[144,128]{1,0:T(1,128)}', space=vmem, size = 0x12000, scoped, tag = 'internal scratch']
  %s0 = inlined_call_operand.hbm [shape: f32[8,8], index: 0, kind: input, shape index: {}]
  %s1 = inlined_call_operand.hbm [shape: f32[288,128], index: 1, kind: input, shape index: {}]
  %s2 = inlined_call_operand.vmem [shape: f32[8,4], index: 2, kind: output, shape index: {}]
  %s3 = sld [smem:[#allocation0]]
  $region26: #{qnetwork_forward.1} parent=0
    _
  %s5 = ssub.s32 1, %s3
  %s6 = scalar_select 0, %s5, %s3
  $region1: #{qnetwork_forward.1} parent=0
    #allocation2 [shape = 'u8[4096]{0}', space=vmem, size = 0x1000, scoped, tag = 'input window, operand 0, single buffered']
    #allocation3 [shape = 's32[1]{0}', space=sflag, size = 0x4, scoped, tag = 'scoped memory for qnetwork_forward.1']
    #allocation4 [shape = 'u8[147456]{0}', space=vmem, size = 0x24000, scoped, tag = 'input window, operand 1, single buffered']
    #allocation5 [shape = 's32[1]{0}', space=sflag, size = 0x4, scoped, tag = 'scoped memory for qnetwork_forward.1']
    %7 = vsyncpa [#allocation3], 0
    %8 = vsyncpa [#allocation5], 0
    // Predicated region
    $region2: #{qnetwork_forward.1} parent=1 // pred_check
      _
    $region3: #{qnetwork_forward.1} parent=1 // pred_check_branch
      %10 = sbr.rel (0) target = $region5
    $region4: #{qnetwork_forward.1} parent=1 // pred_region
      %s12 = ssub.s32 128, 128
      %13 = vsyncadd [#allocation3], %s12
      %s15 = sshll.u32 [#allocation2], 4
      %s16 = int_to_ptr.vmem [resolvable:$true] %s15
      %18 = dma.hbm_to_vmem [thread:$0]  %s0, 128, %s16, [#allocation3]
    $region5: #{qnetwork_forward.1} parent=1 // pred_fallthru
      _
    // Predicated region
    $region6: #{qnetwork_forward.1} parent=1 // pred_check
      _
    $region7: #{qnetwork_forward.1} parent=1 // pred_check_branch
      %20 = sbr.rel (0) target = $region9
    $region8: #{qnetwork_forward.1} parent=1 // pred_region
      %s22 = ssub.s32 4608, 4608
      %23 = vsyncadd [#allocation5], %s22
      %s24 = sshll.u32 [#allocation4], 4
      %s25 = int_to_ptr.vmem [resolvable:$true] %s24
      %30 = dma.hbm_to_vmem [thread:$0]  %s1, 4608, %s25, [#allocation5], 128, 128, 8
    $region9: #{qnetwork_forward.1} parent=1 // pred_fallthru
      _
    // Predicated region
    $region10: #{qnetwork_forward.1} parent=1 // pred_check
      _
    $region11: #{qnetwork_forward.1} parent=1 // pred_check_branch
      %32 = sbr.rel (0) target = $region13
    $region12: #{qnetwork_forward.1} parent=1 // pred_region
      %33 = dma.done [#allocation3], 128
    $region13: #{qnetwork_forward.1} parent=1 // pred_fallthru
      _
    // Predicated region
    $region14: #{qnetwork_forward.1} parent=1 // pred_check
      _
    $region15: #{qnetwork_forward.1} parent=1 // pred_check_branch
      %35 = sbr.rel (0) target = $region17
    $region16: #{qnetwork_forward.1} parent=1 // pred_region
      %36 = dma.done [#allocation5], 4608
    $region17: #{qnetwork_forward.1} parent=1 // pred_fallthru
      _
    %v37 = vld [vmem:[#allocation2] sm:$0xff]
    %v38 = vld [vmem:[#allocation4] sm:$0xff]
    %v39 = vld [vmem:[#allocation4 + $0x8] sm:$0x1]
    %v40 = vlaneseq
    %v41 = vshrl.u32 %v40, 7
    %v42 = vsub.s32 0, %v41
    %v43 = vrot.slane %v39, %v42
    %vm44 = vcmask 64512
    %v46 = vsel %vm44, %v37, 0
    %48 = vmatprep.subr.mxu0 0.0
    %49 = vmatpush1.msra.mxu0 %v38
    %50 = vmatprep.subr.mxu0 0.0
    %51 = vmatpush1.msra.mxu0 0.0
    %52 = vmatprep.subr.mxu0 0.0
    %53 = vmatpush1.msra.mxu0 0.0
    %54 = vmatprep.subr.mxu0 0.0
    %55 = vmatpush1.msra.mxu0 0.0
    %56 = vmatprep.subr.mxu0 0.0
    %57 = vmatpush1.msra.mxu0 0.0
    %58 = vmatprep.subr.mxu0 0.0
    %59 = vmatpush1.msra.mxu0 0.0
    %60 = vmatprep.subr.mxu0 0.0
    %61 = vmatpush1.msra.mxu0 0.0
    %62 = vmatprep.subr.mxu0 0.0
    %63 = vmatpush1.msra.mxu0 0.0
    %64 = vmatprep.subr.mxu0 0.0
    %65 = vmatpush1.msra.mxu0 0.0
    %66 = vmatprep.subr.mxu0 0.0
    %67 = vmatpush1.msra.mxu0 0.0
    %68 = vmatprep.subr.mxu0 0.0
    %69 = vmatpush1.msra.mxu0 0.0
    %70 = vmatprep.subr.mxu0 0.0
    %71 = vmatpush1.msra.mxu0 0.0
    %72 = vmatprep.subr.mxu0 0.0
    %73 = vmatpush1.msra.mxu0 0.0
    %74 = vmatprep.subr.mxu0 0.0
    %75 = vmatpush1.msra.mxu0 0.0
    %76 = vmatprep.subr.mxu0 0.0
    %77 = vmatpush1.msra.mxu0 0.0
    %78 = vmatprep.subr.mxu0 0.0
    %79 = vmatpush1.msra.mxu0 0.0
    %80 = vmatprep.subr.mxu0 0.0
    %81 = vmatpush1.msra.mxu0 0.0
    %82 = vmatprep.subr.mxu0 0.0
    %83 = vmatpush1.msra.mxu0 0.0
    %84 = vmatprep.subr.mxu0 0.0
    %85 = vmatpush1.msra.mxu0 0.0
    %86 = vmatprep.subr.mxu0 0.0
    %87 = vmatpush1.msra.mxu0 0.0
    %88 = vmatprep.subr.mxu0 0.0
    %89 = vmatpush1.msra.mxu0 0.0
    %90 = vmatprep.subr.mxu0 0.0
    %91 = vmatpush1.msra.mxu0 0.0
    %92 = vmatprep.subr.mxu0 0.0
    %93 = vmatpush1.msra.mxu0 0.0
    %94 = vmatprep.subr.mxu0 0.0
    %95 = vmatpush1.msra.mxu0 0.0
    %96 = vmatprep.subr.mxu0 0.0
    %97 = vmatpush1.msra.mxu0 0.0
    %98 = vmatprep.subr.mxu0 0.0
    %99 = vmatpush1.msra.mxu0 0.0
    %100 = vmatprep.subr.mxu0 0.0
    %101 = vmatpush1.msra.mxu0 0.0
    %102 = vmatprep.subr.mxu0 0.0
    %103 = vmatpush1.msra.mxu0 0.0
    %104 = vmatprep.subr.mxu0 0.0
    %105 = vmatpush1.msra.mxu0 0.0
    %106 = vmatprep.subr.mxu0 0.0
    %107 = vmatpush1.msra.mxu0 0.0
    %108 = vmatprep.subr.mxu0 0.0
    %109 = vmatpush1.msra.mxu0 0.0
    %110 = vmatprep.subr.mxu0 0.0
    %111 = vmatpush1.msra.mxu0 0.0
    %112 = vmatprep.mubr.f32.mxu0 0.0
    %113 = vmatmul.mubr.f32.gmra.mrb[0].mxu0 %v46
    %v114 = vpop.f32.mrb[0].mxu0
    %v115 = vadd.f32 %v43, %v114
    %v116 = vpop.f32.mrb[0].mxu0
    %117 = vdwg.mxu0
    %v118 = vmax.f32 %v115, 0.0
    %v119 = vld [vmem:[#allocation4 + $0x10] sm:$0xff]
    %v120 = vld [vmem:[#allocation4 + $0x18] sm:$0xff]
    %v121 = vld [vmem:[#allocation4 + $0x20] sm:$0xff]
    %v122 = vld [vmem:[#allocation4 + $0x28] sm:$0xff]
    %v123 = vld [vmem:[#allocation4 + $0x30] sm:$0xff]
    %v124 = vld [vmem:[#allocation4 + $0x38] sm:$0xff]
    %v125 = vld [vmem:[#allocation4 + $0x40] sm:$0xff]
    %v126 = vld [vmem:[#allocation4 + $0x48] sm:$0xff]
    %v127 = vld [vmem:[#allocation4 + $0x50] sm:$0xff]
    %v128 = vld [vmem:[#allocation4 + $0x58] sm:$0xff]
    %v129 = vld [vmem:[#allocation4 + $0x60] sm:$0xff]
    %v130 = vld [vmem:[#allocation4 + $0x68] sm:$0xff]
    %v131 = vld [vmem:[#allocation4 + $0x70] sm:$0xff]
    %v132 = vld [vmem:[#allocation4 + $0x78] sm:$0xff]
    %v133 = vld [vmem:[#allocation4 + $0x80] sm:$0xff]
    %v134 = vld [vmem:[#allocation4 + $0x88] sm:$0xff]
    %v135 = vld [vmem:[#allocation4 + $0x90] sm:$0x1]
    %v136 = vlaneseq
    %v137 = vshrl.u32 %v136, 7
    %v138 = vsub.s32 0, %v137
    %v139 = vrot.slane %v135, %v138
    %140 = vmatprep.subr.mxu0 0.0
    %141 = vmatpush1.msra.mxu0 %v119
    %142 = vmatprep.subr.mxu0 0.0
    %143 = vmatpush1.msra.mxu0 %v120
    %144 = vmatprep.subr.mxu0 0.0
    %145 = vmatpush1.msra.mxu0 %v121
    %146 = vmatprep.subr.mxu0 0.0
    %147 = vmatpush1.msra.mxu0 %v122
    %148 = vmatprep.subr.mxu0 0.0
    %149 = vmatpush1.msra.mxu0 %v123
    %150 = vmatprep.subr.mxu0 0.0
    %151 = vmatpush1.msra.mxu0 %v124
    %152 = vmatprep.subr.mxu0 0.0
    %153 = vmatpush1.msra.mxu0 %v125
    %154 = vmatprep.subr.mxu0 0.0
    %155 = vmatpush1.msra.mxu0 %v126
    %156 = vmatprep.subr.mxu0 0.0
    %157 = vmatpush1.msra.mxu0 %v127
    %158 = vmatprep.subr.mxu0 0.0
    %159 = vmatpush1.msra.mxu0 %v128
    %160 = vmatprep.subr.mxu0 0.0
    %161 = vmatpush1.msra.mxu0 %v129
    %162 = vmatprep.subr.mxu0 0.0
    %163 = vmatpush1.msra.mxu0 %v130
    %164 = vmatprep.subr.mxu0 0.0
    %165 = vmatpush1.msra.mxu0 %v131
    %166 = vmatprep.subr.mxu0 0.0
    %167 = vmatpush1.msra.mxu0 %v132
    %168 = vmatprep.subr.mxu0 0.0
    %169 = vmatpush1.msra.mxu0 %v133
    %170 = vmatprep.subr.mxu0 0.0
    %171 = vmatpush1.msra.mxu0 %v134
    %172 = vmatprep.subr.mxu0 0.0
    %173 = vmatpush1.msra.mxu0 0.0
    %174 = vmatprep.subr.mxu0 0.0
    %175 = vmatpush1.msra.mxu0 0.0
    %176 = vmatprep.subr.mxu0 0.0
    %177 = vmatpush1.msra.mxu0 0.0
    %178 = vmatprep.subr.mxu0 0.0
    %179 = vmatpush1.msra.mxu0 0.0
    %180 = vmatprep.subr.mxu0 0.0
    %181 = vmatpush1.msra.mxu0 0.0
    %182 = vmatprep.subr.mxu0 0.0
    %183 = vmatpush1.msra.mxu0 0.0
    %184 = vmatprep.subr.mxu0 0.0
    %185 = vmatpush1.msra.mxu0 0.0
    %186 = vmatprep.subr.mxu0 0.0
    %187 = vmatpush1.msra.mxu0 0.0
    %188 = vmatprep.subr.mxu0 0.0
    %189 = vmatpush1.msra.mxu0 0.0
    %190 = vmatprep.subr.mxu0 0.0
    %191 = vmatpush1.msra.mxu0 0.0
    %192 = vmatprep.subr.mxu0 0.0
    %193 = vmatpush1.msra.mxu0 0.0
    %194 = vmatprep.subr.mxu0 0.0
    %195 = vmatpush1.msra.mxu0 0.0
    %196 = vmatprep.subr.mxu0 0.0
    %197 = vmatpush1.msra.mxu0 0.0
    %198 = vmatprep.subr.mxu0 0.0
    %199 = vmatpush1.msra.mxu0 0.0
    %200 = vmatprep.subr.mxu0 0.0
    %201 = vmatpush1.msra.mxu0 0.0
    %202 = vmatprep.subr.mxu0 0.0
    %203 = vmatpush1.msra.mxu0 0.0
    %204 = vmatprep.mubr.f32.mxu0 0.0
    %205 = vmatmul.mubr.f32.gmra.mrb[0].mxu0 %v118
    %v206 = vpop.f32.mrb[0].mxu0
    %v207 = vadd.f32 %v139, %v206
    %v208 = vpop.f32.mrb[0].mxu0
    %209 = vdwg.mxu0
    %v210 = vmax.f32 %v207, 0.0
    %v211 = vld [vmem:[#allocation4 + $0x98] sm:$0xff]
    %v212 = vld [vmem:[#allocation4 + $0xa0] sm:$0xff]
    %v213 = vld [vmem:[#allocation4 + $0xa8] sm:$0xff]
    %v214 = vld [vmem:[#allocation4 + $0xb0] sm:$0xff]
    %v215 = vld [vmem:[#allocation4 + $0xb8] sm:$0xff]
    %v216 = vld [vmem:[#allocation4 + $0xc0] sm:$0xff]
    %v217 = vld [vmem:[#allocation4 + $0xc8] sm:$0xff]
    %v218 = vld [vmem:[#allocation4 + $0xd0] sm:$0xff]
    %v219 = vld [vmem:[#allocation4 + $0xd8] sm:$0xff]
    %v220 = vld [vmem:[#allocation4 + $0xe0] sm:$0xff]
    %v221 = vld [vmem:[#allocation4 + $0xe8] sm:$0xff]
    %v222 = vld [vmem:[#allocation4 + $0xf0] sm:$0xff]
    %v223 = vld [vmem:[#allocation4 + $0xf8] sm:$0xff]
    %v224 = vld [vmem:[#allocation4 + $0x100] sm:$0xff]
    %v225 = vld [vmem:[#allocation4 + $0x108] sm:$0xff]
    %v226 = vld [vmem:[#allocation4 + $0x110] sm:$0xff]
    %v227 = vld [vmem:[#allocation4 + $0x118] sm:$0x1]
    %v228 = vlaneseq
    %v229 = vshrl.u32 %v228, 7
    %v230 = vsub.s32 0, %v229
    %v231 = vrot.slane %v227, %v230
    %232 = vmatprep.subr.mxu0 0.0
    %233 = vmatpush1.msra.mxu0 %v211
    %234 = vmatprep.subr.mxu0 0.0
    %235 = vmatpush1.msra.mxu0 %v212
    %236 = vmatprep.subr.mxu0 0.0
    %237 = vmatpush1.msra.mxu0 %v213
    %238 = vmatprep.subr.mxu0 0.0
    %239 = vmatpush1.msra.mxu0 %v214
    %240 = vmatprep.subr.mxu0 0.0
    %241 = vmatpush1.msra.mxu0 %v215
    %242 = vmatprep.subr.mxu0 0.0
    %243 = vmatpush1.msra.mxu0 %v216
    %244 = vmatprep.subr.mxu0 0.0
    %245 = vmatpush1.msra.mxu0 %v217
    %246 = vmatprep.subr.mxu0 0.0
    %247 = vmatpush1.msra.mxu0 %v218
    %248 = vmatprep.subr.mxu0 0.0
    %249 = vmatpush1.msra.mxu0 %v219
    %250 = vmatprep.subr.mxu0 0.0
    %251 = vmatpush1.msra.mxu0 %v220
    %252 = vmatprep.subr.mxu0 0.0
    %253 = vmatpush1.msra.mxu0 %v221
    %254 = vmatprep.subr.mxu0 0.0
    %255 = vmatpush1.msra.mxu0 %v222
    %256 = vmatprep.subr.mxu0 0.0
    %257 = vmatpush1.msra.mxu0 %v223
    %258 = vmatprep.subr.mxu0 0.0
    %259 = vmatpush1.msra.mxu0 %v224
    %260 = vmatprep.subr.mxu0 0.0
    %261 = vmatpush1.msra.mxu0 %v225
    %262 = vmatprep.subr.mxu0 0.0
    %263 = vmatpush1.msra.mxu0 %v226
    %264 = vmatprep.subr.mxu0 0.0
    %265 = vmatpush1.msra.mxu0 0.0
    %266 = vmatprep.subr.mxu0 0.0
    %267 = vmatpush1.msra.mxu0 0.0
    %268 = vmatprep.subr.mxu0 0.0
    %269 = vmatpush1.msra.mxu0 0.0
    %270 = vmatprep.subr.mxu0 0.0
    %271 = vmatpush1.msra.mxu0 0.0
    %272 = vmatprep.subr.mxu0 0.0
    %273 = vmatpush1.msra.mxu0 0.0
    %274 = vmatprep.subr.mxu0 0.0
    %275 = vmatpush1.msra.mxu0 0.0
    %276 = vmatprep.subr.mxu0 0.0
    %277 = vmatpush1.msra.mxu0 0.0
    %278 = vmatprep.subr.mxu0 0.0
    %279 = vmatpush1.msra.mxu0 0.0
    %280 = vmatprep.subr.mxu0 0.0
    %281 = vmatpush1.msra.mxu0 0.0
    %282 = vmatprep.subr.mxu0 0.0
    %283 = vmatpush1.msra.mxu0 0.0
    %284 = vmatprep.subr.mxu0 0.0
    %285 = vmatpush1.msra.mxu0 0.0
    %286 = vmatprep.subr.mxu0 0.0
    %287 = vmatpush1.msra.mxu0 0.0
    %288 = vmatprep.subr.mxu0 0.0
    %289 = vmatpush1.msra.mxu0 0.0
    %290 = vmatprep.subr.mxu0 0.0
    %291 = vmatpush1.msra.mxu0 0.0
    %292 = vmatprep.subr.mxu0 0.0
    %293 = vmatpush1.msra.mxu0 0.0
    %294 = vmatprep.subr.mxu0 0.0
    %295 = vmatpush1.msra.mxu0 0.0
    %296 = vmatprep.mubr.f32.mxu0 0.0
    %297 = vmatmul.mubr.f32.gmra.mrb[0].mxu0 %v210
    %v298 = vpop.f32.mrb[0].mxu0
    %v299 = vadd.f32 %v231, %v298
    %v300 = vpop.f32.mrb[0].mxu0
    %301 = vdwg.mxu0
    %vm302 = vcmask 31744
    %303 = vst.msk [vmem:[%s2] sm:$0xff] %vm302, %v299
    // Predicated region
    $region18: #{qnetwork_forward.1} parent=1 // pred_check
      _
    $region19: #{qnetwork_forward.1} parent=1 // pred_check_branch
      %305 = sbr.rel (0) target = $region21
    $region20: #{qnetwork_forward.1} parent=1 // pred_region
      _
    $region21: #{qnetwork_forward.1} parent=1 // pred_fallthru
      _
    // Predicated region
    $region22: #{qnetwork_forward.1} parent=1 // pred_check
      _
    $region23: #{qnetwork_forward.1} parent=1 // pred_check_branch
      %307 = sbr.rel (0) target = $region25
    $region24: #{qnetwork_forward.1} parent=1 // pred_region
      _
    $region25: #{qnetwork_forward.1} parent=1 // pred_fallthru
      _
    %308 = vsyncpa [#allocation3], 1
    %309 = vsyncpa [#allocation5], 1

</llo_original>
